<compile_context>
chip_gen: v6e
topology: v6e:2x2x1
jax: 0.10.0
libtpu: 0.0.40
codegen_flags: <defaults>
</compile_context>

<pallas_src>
import functools

import jax
import jax.numpy as jnp
import numpy as np
from jax.experimental import pallas as pl
from jax.experimental.pallas import tpu as pltpu

KH = KW = 3     # kernel_size = 3, dilation = 1
PAD = 1         # get_same_padding(3, 1) == 1
SUBLANE = 8     # f32 sublane tile


def _round_up(x, m):
    return (x + m - 1) // m * m


def _tap_masks(H, W):
    """(9, 1, H*W) float32 validity masks, one per 3x3 tap (dr, dc), row-major tap order."""
    rows = np.arange(H)[:, None]
    cols = np.arange(W)[None, :]
    masks = np.zeros((KH * KW, 1, H * W), np.float32)
    t = 0
    for dr in (-1, 0, 1):
        for dc in (-1, 0, 1):
            valid = ((rows + dr >= 0) & (rows + dr < H) &
                     (cols + dc >= 0) & (cols + dc < W))
            masks[t, 0, :] = valid.reshape(-1).astype(np.float32)
            t += 1
    return jnp.asarray(masks)


def _resblock_kernel(W, x_ref, masks_ref, w1_ref, b1_ref, w2_ref, b2_ref, o_ref):
    # x_ref    : (1, CinP, P)     one image; channels in sublanes, pixels in lanes
    # masks_ref: (9, 1, P)        per-tap boundary masks ("same" padding, applied post-roll)
    # w1_ref   : (CmidP, 9*CinP)  conv1 weights, tap-major / channel-minor contraction dim
    # b1_ref   : (CmidP, 1)
    # w2_ref   : (Cout, 9*CmidP)  conv2 weights
    # b2_ref   : (Cout, 1)
    # o_ref    : (1, Cout, P)
    P = x_ref.shape[-1]
    cout = o_ref.shape[1]
    x = x_ref[0]                                        # (CinP, P)

    def conv3x3(inp, w, b):
        # Build the 9-tap im2col operand with lane rotations (XLU) + boundary masks (VPU),
        # then contract taps*channels in a single MXU push.
        taps = []
        for t in range(KH * KW):
            dr, dc = t // KW - 1, t % KW - 1
            if dr == 0 and dc == 0:
                taps.append(inp)                        # centre tap: no shift, mask all-ones
            else:
                shift = (-(dr * W + dc)) % P            # rolled[p] == inp[p + dr*W + dc]
                rolled = pltpu.roll(inp, shift=shift, axis=1)
                taps.append(rolled * masks_ref[t])
        patches = jnp.concatenate(taps, axis=0)         # (9*C, P), sublane-aligned pieces
        return jnp.dot(w, patches, preferred_element_type=jnp.float32) + b

    a1 = jnp.maximum(conv3x3(x, w1_ref[...], b1_ref[...]), 0.0)    # relu(conv1(x))
    a2 = conv3x3(a1, w2_ref[...], b2_ref[...])                     # conv2(...)
    o_ref[0] = (a2 + x[0:cout, :]).astype(o_ref.dtype)             # identity residual


@jax.jit
def resblock_forward(x_nchw, w1_oihw, b1, w2_oihw, b2):
    """ResBlock forward. x_nchw: (N, C, H, W) float32; weights in PyTorch OIHW layout."""
    N, C, H, W = x_nchw.shape
    Cmid = w1_oihw.shape[0]
    Cout = w2_oihw.shape[0]
    assert C == Cout, "identity-residual kernel requires inplanes == planes (stride == 1)"
    P = H * W
    CinP = _round_up(C, SUBLANE)
    CmidP = _round_up(Cmid, SUBLANE)

    # NCHW stays NCHW: free reshape + tiny channel zero-pad to fill the sublane tile.
    x_flat = x_nchw.reshape(N, C, P).astype(jnp.float32)
    x_flat = jnp.pad(x_flat, ((0, 0), (0, CinP - C), (0, 0)))

    # Weights -> (out_ch, 9 * in_ch_padded), tap-major / channel-minor, matching the
    # in-kernel im2col tap ordering ((dr, dc) row-major).
    w1t = jnp.transpose(w1_oihw, (0, 2, 3, 1)).astype(jnp.float32)       # (Cmid, 3, 3, C)
    w1t = jnp.pad(w1t, ((0, CmidP - Cmid), (0, 0), (0, 0), (0, CinP - C)))
    w1r = w1t.reshape(CmidP, KH * KW * CinP)
    w2t = jnp.transpose(w2_oihw, (0, 2, 3, 1)).astype(jnp.float32)       # (Cout, 3, 3, Cmid)
    w2t = jnp.pad(w2t, ((0, 0), (0, 0), (0, 0), (0, CmidP - Cmid)))
    w2r = w2t.reshape(Cout, KH * KW * CmidP)
    b1r = jnp.pad(b1.astype(jnp.float32).reshape(Cmid, 1), ((0, CmidP - Cmid), (0, 0)))
    b2r = b2.astype(jnp.float32).reshape(Cout, 1)

    masks = _tap_masks(H, W)                                             # (9, 1, P)

    out_flat = pl.pallas_call(
        functools.partial(_resblock_kernel, W),
        out_shape=jax.ShapeDtypeStruct((N, Cout, P), jnp.float32),
        grid_spec=pltpu.PrefetchScalarGridSpec(
            num_scalar_prefetch=0,
            grid=(N,),
            in_specs=[
                pl.BlockSpec((1, CinP, P), lambda n: (n, 0, 0)),
                pl.BlockSpec((KH * KW, 1, P), lambda n: (0, 0, 0)),
                pl.BlockSpec((CmidP, KH * KW * CinP), lambda n: (0, 0)),
                pl.BlockSpec((CmidP, 1), lambda n: (0, 0)),
                pl.BlockSpec((Cout, KH * KW * CmidP), lambda n: (0, 0)),
                pl.BlockSpec((Cout, 1), lambda n: (0, 0)),
            ],
            out_specs=pl.BlockSpec((1, Cout, P), lambda n: (n, 0, 0)),
        ),
        compiler_params=pltpu.CompilerParams(
            dimension_semantics=("parallel",)),   # batch elems independent -> both v7x TCs
    )(x_flat, masks, w1r, b1r, w2r, b2r)

    return out_flat.reshape(N, Cout, H, W)


def ref_forward(x, w1, b1, w2, b2):
    """Pure-JAX reference matching the PyTorch ResBlock forward (NCHW)."""
    dn = ("NCHW", "OIHW", "NCHW")
    out = jax.lax.conv_general_dilated(
        x, w1, (1, 1), ((PAD, PAD), (PAD, PAD)), dimension_numbers=dn)
    out = out + b1[None, :, None, None]
    out = jnp.maximum(out, 0.0)
    out = jax.lax.conv_general_dilated(
        out, w2, (1, 1), ((PAD, PAD), (PAD, PAD)), dimension_numbers=dn)
    out = out + b2[None, :, None, None]
    return out + x


if __name__ == "__main__":
    # ResBlock(inplanes=4, planes=4, kernel_size=3, stride=1, dilation=1)
    N, C, H, W = 2, 4, 16, 16
    planes = 4

    key = jax.random.PRNGKey(0)
    kx, k1, kb1, k2, kb2 = jax.random.split(key, 5)

    x = jax.random.normal(kx, (N, C, H, W), dtype=jnp.float32)
    # deterministic synthetic conv params (OIHW, like nn.Conv2d.weight)
    fan_in1 = C * KH * KW
    fan_in2 = planes * KH * KW
    w1 = jax.random.uniform(k1, (planes, C, KH, KW), jnp.float32,
                            -1.0 / jnp.sqrt(fan_in1), 1.0 / jnp.sqrt(fan_in1))
    b1 = jax.random.uniform(kb1, (planes,), jnp.float32,
                            -1.0 / jnp.sqrt(fan_in1), 1.0 / jnp.sqrt(fan_in1))
    w2 = jax.random.uniform(k2, (planes, planes, KH, KW), jnp.float32,
                            -1.0 / jnp.sqrt(fan_in2), 1.0 / jnp.sqrt(fan_in2))
    b2 = jax.random.uniform(kb2, (planes,), jnp.float32,
                            -1.0 / jnp.sqrt(fan_in2), 1.0 / jnp.sqrt(fan_in2))

    out = resblock_forward(x, w1, b1, w2, b2)
    out = jax.block_until_ready(out)

    ref = jax.block_until_ready(ref_forward(x, w1, b1, w2, b2))
    assert out.shape == (N, planes, H, W)
    assert jnp.allclose(out, ref, atol=1e-4, rtol=1e-4), \
        f"max abs err = {jnp.max(jnp.abs(out - ref))}"

    print("KERNEL_OK")
</pallas_src>

<mosaic_0001>
module attributes {stable_mosaic.version = 11 : i64} {
  func.func @_resblock_kernel(%arg0: i32, %arg1: memref<1x8x256xf32, #tpu.memory_space<vmem>>, %arg2: memref<9x1x256xf32, #tpu.memory_space<vmem>>, %arg3: memref<8x72xf32, #tpu.memory_space<vmem>>, %arg4: memref<8x1xf32, #tpu.memory_space<vmem>>, %arg5: memref<4x72xf32, #tpu.memory_space<vmem>>, %arg6: memref<4x1xf32, #tpu.memory_space<vmem>>, %arg7: memref<1x4x256xf32, #tpu.memory_space<vmem>>) attributes {dimension_semantics = [#tpu.dimension_semantics<parallel>], iteration_bounds = array<i64: 2>, scalar_prefetch = 0 : i64, scratch_operands = 0 : i64, tpu.core_type = #tpu.core_type<tc>, window_params = [{transform_indices = @transform_0, window_bounds = array<i64: 1, 8, 256>}, {pipeline_mode = #tpu.pipeline_mode<synchronous>, transform_indices = @transform_1, window_bounds = array<i64: 9, 1, 256>}, {pipeline_mode = #tpu.pipeline_mode<synchronous>, transform_indices = @transform_2, window_bounds = array<i64: 8, 72>}, {pipeline_mode = #tpu.pipeline_mode<synchronous>, transform_indices = @transform_3, window_bounds = array<i64: 8, 1>}, {pipeline_mode = #tpu.pipeline_mode<synchronous>, transform_indices = @transform_4, window_bounds = array<i64: 4, 72>}, {pipeline_mode = #tpu.pipeline_mode<synchronous>, transform_indices = @transform_5, window_bounds = array<i64: 4, 1>}, {transform_indices = @transform_6, window_bounds = array<i64: 1, 4, 256>}]} {
    %c0 = arith.constant 0 : index
    %c0_0 = arith.constant 0 : index
    %c0_1 = arith.constant 0 : index
    %0 = vector.load %arg1[%c0, %c0_0, %c0_1] : memref<1x8x256xf32, #tpu.memory_space<vmem>>, vector<1x8x256xf32>
    %1 = vector.shape_cast %0 : vector<1x8x256xf32> to vector<8x256xf32>
    %c0_2 = arith.constant 0 : index
    %c0_3 = arith.constant 0 : index
    %2 = vector.load %arg3[%c0_2, %c0_3] : memref<8x72xf32, #tpu.memory_space<vmem>>, vector<8x72xf32>
    %c0_4 = arith.constant 0 : index
    %c0_5 = arith.constant 0 : index
    %3 = vector.load %arg4[%c0_4, %c0_5] : memref<8x1xf32, #tpu.memory_space<vmem>>, vector<8x1xf32>
    %c17_i32 = arith.constant 17 : i32
    %4 = tpu.dynamic_rotate %1 by %c17_i32 dim 1 : vector<8x256xf32>, i32 -> vector<8x256xf32>
    %c0_6 = arith.constant 0 : index
    %c0_7 = arith.constant 0 : index
    %c0_8 = arith.constant 0 : index
    %5 = vector.load %arg2[%c0_6, %c0_7, %c0_8] : memref<9x1x256xf32, #tpu.memory_space<vmem>>, vector<1x1x256xf32>
    %6 = vector.shape_cast %5 : vector<1x1x256xf32> to vector<1x256xf32>
    %7 = vector.broadcast %6 : vector<1x256xf32> to vector<8x256xf32>
    %8 = arith.mulf %4, %7 : vector<8x256xf32>
    %c16_i32 = arith.constant 16 : i32
    %9 = tpu.dynamic_rotate %1 by %c16_i32 dim 1 : vector<8x256xf32>, i32 -> vector<8x256xf32>
    %c1 = arith.constant 1 : index
    %c0_9 = arith.constant 0 : index
    %c0_10 = arith.constant 0 : index
    %10 = vector.load %arg2[%c1, %c0_9, %c0_10] : memref<9x1x256xf32, #tpu.memory_space<vmem>>, vector<1x1x256xf32>
    %11 = vector.shape_cast %10 : vector<1x1x256xf32> to vector<1x256xf32>
    %12 = vector.broadcast %11 : vector<1x256xf32> to vector<8x256xf32>
    %13 = arith.mulf %9, %12 : vector<8x256xf32>
    %c15_i32 = arith.constant 15 : i32
    %14 = tpu.dynamic_rotate %1 by %c15_i32 dim 1 : vector<8x256xf32>, i32 -> vector<8x256xf32>
    %c2 = arith.constant 2 : index
    %c0_11 = arith.constant 0 : index
    %c0_12 = arith.constant 0 : index
    %15 = vector.load %arg2[%c2, %c0_11, %c0_12] : memref<9x1x256xf32, #tpu.memory_space<vmem>>, vector<1x1x256xf32>
    %16 = vector.shape_cast %15 : vector<1x1x256xf32> to vector<1x256xf32>
    %17 = vector.broadcast %16 : vector<1x256xf32> to vector<8x256xf32>
    %18 = arith.mulf %14, %17 : vector<8x256xf32>
    %c1_i32 = arith.constant 1 : i32
    %19 = tpu.dynamic_rotate %1 by %c1_i32 dim 1 : vector<8x256xf32>, i32 -> vector<8x256xf32>
    %c3 = arith.constant 3 : index
    %c0_13 = arith.constant 0 : index
    %c0_14 = arith.constant 0 : index
    %20 = vector.load %arg2[%c3, %c0_13, %c0_14] : memref<9x1x256xf32, #tpu.memory_space<vmem>>, vector<1x1x256xf32>
    %21 = vector.shape_cast %20 : vector<1x1x256xf32> to vector<1x256xf32>
    %22 = vector.broadcast %21 : vector<1x256xf32> to vector<8x256xf32>
    %23 = arith.mulf %19, %22 : vector<8x256xf32>
    %c255_i32 = arith.constant 255 : i32
    %24 = tpu.dynamic_rotate %1 by %c255_i32 dim 1 : vector<8x256xf32>, i32 -> vector<8x256xf32>
    %c5 = arith.constant 5 : index
    %c0_15 = arith.constant 0 : index
    %c0_16 = arith.constant 0 : index
    %25 = vector.load %arg2[%c5, %c0_15, %c0_16] : memref<9x1x256xf32, #tpu.memory_space<vmem>>, vector<1x1x256xf32>
    %26 = vector.shape_cast %25 : vector<1x1x256xf32> to vector<1x256xf32>
    %27 = vector.broadcast %26 : vector<1x256xf32> to vector<8x256xf32>
    %28 = arith.mulf %24, %27 : vector<8x256xf32>
    %c241_i32 = arith.constant 241 : i32
    %29 = tpu.dynamic_rotate %1 by %c241_i32 dim 1 : vector<8x256xf32>, i32 -> vector<8x256xf32>
    %c6 = arith.constant 6 : index
    %c0_17 = arith.constant 0 : index
    %c0_18 = arith.constant 0 : index
    %30 = vector.load %arg2[%c6, %c0_17, %c0_18] : memref<9x1x256xf32, #tpu.memory_space<vmem>>, vector<1x1x256xf32>
    %31 = vector.shape_cast %30 : vector<1x1x256xf32> to vector<1x256xf32>
    %32 = vector.broadcast %31 : vector<1x256xf32> to vector<8x256xf32>
    %33 = arith.mulf %29, %32 : vector<8x256xf32>
    %c240_i32 = arith.constant 240 : i32
    %34 = tpu.dynamic_rotate %1 by %c240_i32 dim 1 : vector<8x256xf32>, i32 -> vector<8x256xf32>
    %c7 = arith.constant 7 : index
    %c0_19 = arith.constant 0 : index
    %c0_20 = arith.constant 0 : index
    %35 = vector.load %arg2[%c7, %c0_19, %c0_20] : memref<9x1x256xf32, #tpu.memory_space<vmem>>, vector<1x1x256xf32>
    %36 = vector.shape_cast %35 : vector<1x1x256xf32> to vector<1x256xf32>
    %37 = vector.broadcast %36 : vector<1x256xf32> to vector<8x256xf32>
    %38 = arith.mulf %34, %37 : vector<8x256xf32>
    %c239_i32 = arith.constant 239 : i32
    %39 = tpu.dynamic_rotate %1 by %c239_i32 dim 1 : vector<8x256xf32>, i32 -> vector<8x256xf32>
    %c8 = arith.constant 8 : index
    %c0_21 = arith.constant 0 : index
    %c0_22 = arith.constant 0 : index
    %40 = vector.load %arg2[%c8, %c0_21, %c0_22] : memref<9x1x256xf32, #tpu.memory_space<vmem>>, vector<1x1x256xf32>
    %41 = vector.shape_cast %40 : vector<1x1x256xf32> to vector<1x256xf32>
    %42 = vector.broadcast %41 : vector<1x256xf32> to vector<8x256xf32>
    %43 = arith.mulf %39, %42 : vector<8x256xf32>
    %44 = tpu.concatenate %8, %13, %18, %23, %1, %28, %33, %38, %43 in 0 : vector<8x256xf32>, vector<8x256xf32>, vector<8x256xf32>, vector<8x256xf32>, vector<8x256xf32>, vector<8x256xf32>, vector<8x256xf32>, vector<8x256xf32>, vector<8x256xf32> -> vector<72x256xf32>
    %cst = arith.constant dense<0.000000e+00> : vector<8x256xf32>
    %45 = tpu.matmul %2, %44, %cst {dimension_numbers = #tpu.dot_dimension_numbers<[1], [0], [0], [1], [0, 0, 1, 1], [], []>} : vector<8x72xf32>, vector<72x256xf32>, vector<8x256xf32> -> vector<8x256xf32>
    %46 = vector.broadcast %3 : vector<8x1xf32> to vector<8x256xf32>
    %47 = arith.addf %45, %46 : vector<8x256xf32>
    %cst_23 = arith.constant 0.000000e+00 : f32
    %48 = vector.broadcast %cst_23 : f32 to vector<8x256xf32>
    %49 = arith.maximumf %47, %48 : vector<8x256xf32>
    %c0_24 = arith.constant 0 : index
    %c0_25 = arith.constant 0 : index
    %50 = vector.load %arg5[%c0_24, %c0_25] : memref<4x72xf32, #tpu.memory_space<vmem>>, vector<4x72xf32>
    %c0_26 = arith.constant 0 : index
    %c0_27 = arith.constant 0 : index
    %51 = vector.load %arg6[%c0_26, %c0_27] : memref<4x1xf32, #tpu.memory_space<vmem>>, vector<4x1xf32>
    %c17_i32_28 = arith.constant 17 : i32
    %52 = tpu.dynamic_rotate %49 by %c17_i32_28 dim 1 : vector<8x256xf32>, i32 -> vector<8x256xf32>
    %c0_29 = arith.constant 0 : index
    %c0_30 = arith.constant 0 : index
    %c0_31 = arith.constant 0 : index
    %53 = vector.load %arg2[%c0_29, %c0_30, %c0_31] : memref<9x1x256xf32, #tpu.memory_space<vmem>>, vector<1x1x256xf32>
    %54 = vector.shape_cast %53 : vector<1x1x256xf32> to vector<1x256xf32>
    %55 = vector.broadcast %54 : vector<1x256xf32> to vector<8x256xf32>
    %56 = arith.mulf %52, %55 : vector<8x256xf32>
    %c16_i32_32 = arith.constant 16 : i32
    %57 = tpu.dynamic_rotate %49 by %c16_i32_32 dim 1 : vector<8x256xf32>, i32 -> vector<8x256xf32>
    %c1_33 = arith.constant 1 : index
    %c0_34 = arith.constant 0 : index
    %c0_35 = arith.constant 0 : index
    %58 = vector.load %arg2[%c1_33, %c0_34, %c0_35] : memref<9x1x256xf32, #tpu.memory_space<vmem>>, vector<1x1x256xf32>
    %59 = vector.shape_cast %58 : vector<1x1x256xf32> to vector<1x256xf32>
    %60 = vector.broadcast %59 : vector<1x256xf32> to vector<8x256xf32>
    %61 = arith.mulf %57, %60 : vector<8x256xf32>
    %c15_i32_36 = arith.constant 15 : i32
    %62 = tpu.dynamic_rotate %49 by %c15_i32_36 dim 1 : vector<8x256xf32>, i32 -> vector<8x256xf32>
    %c2_37 = arith.constant 2 : index
    %c0_38 = arith.constant 0 : index
    %c0_39 = arith.constant 0 : index
    %63 = vector.load %arg2[%c2_37, %c0_38, %c0_39] : memref<9x1x256xf32, #tpu.memory_space<vmem>>, vector<1x1x256xf32>
    %64 = vector.shape_cast %63 : vector<1x1x256xf32> to vector<1x256xf32>
    %65 = vector.broadcast %64 : vector<1x256xf32> to vector<8x256xf32>
    %66 = arith.mulf %62, %65 : vector<8x256xf32>
    %c1_i32_40 = arith.constant 1 : i32
    %67 = tpu.dynamic_rotate %49 by %c1_i32_40 dim 1 : vector<8x256xf32>, i32 -> vector<8x256xf32>
    %c3_41 = arith.constant 3 : index
    %c0_42 = arith.constant 0 : index
    %c0_43 = arith.constant 0 : index
    %68 = vector.load %arg2[%c3_41, %c0_42, %c0_43] : memref<9x1x256xf32, #tpu.memory_space<vmem>>, vector<1x1x256xf32>
    %69 = vector.shape_cast %68 : vector<1x1x256xf32> to vector<1x256xf32>
    %70 = vector.broadcast %69 : vector<1x256xf32> to vector<8x256xf32>
    %71 = arith.mulf %67, %70 : vector<8x256xf32>
    %c255_i32_44 = arith.constant 255 : i32
    %72 = tpu.dynamic_rotate %49 by %c255_i32_44 dim 1 : vector<8x256xf32>, i32 -> vector<8x256xf32>
    %c5_45 = arith.constant 5 : index
    %c0_46 = arith.constant 0 : index
    %c0_47 = arith.constant 0 : index
    %73 = vector.load %arg2[%c5_45, %c0_46, %c0_47] : memref<9x1x256xf32, #tpu.memory_space<vmem>>, vector<1x1x256xf32>
    %74 = vector.shape_cast %73 : vector<1x1x256xf32> to vector<1x256xf32>
    %75 = vector.broadcast %74 : vector<1x256xf32> to vector<8x256xf32>
    %76 = arith.mulf %72, %75 : vector<8x256xf32>
    %c241_i32_48 = arith.constant 241 : i32
    %77 = tpu.dynamic_rotate %49 by %c241_i32_48 dim 1 : vector<8x256xf32>, i32 -> vector<8x256xf32>
    %c6_49 = arith.constant 6 : index
    %c0_50 = arith.constant 0 : index
    %c0_51 = arith.constant 0 : index
    %78 = vector.load %arg2[%c6_49, %c0_50, %c0_51] : memref<9x1x256xf32, #tpu.memory_space<vmem>>, vector<1x1x256xf32>
    %79 = vector.shape_cast %78 : vector<1x1x256xf32> to vector<1x256xf32>
    %80 = vector.broadcast %79 : vector<1x256xf32> to vector<8x256xf32>
    %81 = arith.mulf %77, %80 : vector<8x256xf32>
    %c240_i32_52 = arith.constant 240 : i32
    %82 = tpu.dynamic_rotate %49 by %c240_i32_52 dim 1 : vector<8x256xf32>, i32 -> vector<8x256xf32>
    %c7_53 = arith.constant 7 : index
    %c0_54 = arith.constant 0 : index
    %c0_55 = arith.constant 0 : index
    %83 = vector.load %arg2[%c7_53, %c0_54, %c0_55] : memref<9x1x256xf32, #tpu.memory_space<vmem>>, vector<1x1x256xf32>
    %84 = vector.shape_cast %83 : vector<1x1x256xf32> to vector<1x256xf32>
    %85 = vector.broadcast %84 : vector<1x256xf32> to vector<8x256xf32>
    %86 = arith.mulf %82, %85 : vector<8x256xf32>
    %c239_i32_56 = arith.constant 239 : i32
    %87 = tpu.dynamic_rotate %49 by %c239_i32_56 dim 1 : vector<8x256xf32>, i32 -> vector<8x256xf32>
    %c8_57 = arith.constant 8 : index
    %c0_58 = arith.constant 0 : index
    %c0_59 = arith.constant 0 : index
    %88 = vector.load %arg2[%c8_57, %c0_58, %c0_59] : memref<9x1x256xf32, #tpu.memory_space<vmem>>, vector<1x1x256xf32>
    %89 = vector.shape_cast %88 : vector<1x1x256xf32> to vector<1x256xf32>
    %90 = vector.broadcast %89 : vector<1x256xf32> to vector<8x256xf32>
    %91 = arith.mulf %87, %90 : vector<8x256xf32>
    %92 = tpu.concatenate %56, %61, %66, %71, %49, %76, %81, %86, %91 in 0 : vector<8x256xf32>, vector<8x256xf32>, vector<8x256xf32>, vector<8x256xf32>, vector<8x256xf32>, vector<8x256xf32>, vector<8x256xf32>, vector<8x256xf32>, vector<8x256xf32> -> vector<72x256xf32>
    %cst_60 = arith.constant dense<0.000000e+00> : vector<4x256xf32>
    %93 = tpu.matmul %50, %92, %cst_60 {dimension_numbers = #tpu.dot_dimension_numbers<[1], [0], [0], [1], [0, 0, 1, 1], [], []>} : vector<4x72xf32>, vector<72x256xf32>, vector<4x256xf32> -> vector<4x256xf32>
    %94 = vector.broadcast %51 : vector<4x1xf32> to vector<4x256xf32>
    %95 = arith.addf %93, %94 : vector<4x256xf32>
    %96 = vector.extract_strided_slice %1 {offsets = [0, 0], sizes = [4, 256], strides = [1, 1]} : vector<8x256xf32> to vector<4x256xf32>
    %97 = arith.addf %95, %96 : vector<4x256xf32>
    %c0_61 = arith.constant 0 : index
    %c0_62 = arith.constant 0 : index
    %c0_63 = arith.constant 0 : index
    %98 = vector.load %arg7[%c0_61, %c0_62, %c0_63] : memref<1x4x256xf32, #tpu.memory_space<vmem>>, vector<1x4x256xf32>
    %99 = vector.shape_cast %98 : vector<1x4x256xf32> to vector<4x256xf32>
    %100 = vector.shape_cast %97 : vector<4x256xf32> to vector<1x4x256xf32>
    tpu.vector_store %arg7[%c0_61, %c0_62, %c0_63], %100 {strides = array<i32>} : memref<1x4x256xf32, #tpu.memory_space<vmem>>, vector<1x4x256xf32>,
    return
  }
  func.func @transform_0(%arg0: i32) -> (i32, i32, i32) {
    %c0_i32 = arith.constant 0 : i32
    %c0_i32_0 = arith.constant 0 : i32
    %c0_i32_1 = arith.constant 0 : i32
    return %arg0, %c0_i32, %c0_i32_0 : i32, i32, i32
  }
  func.func @transform_1(%arg0: i32) -> (i32, i32, i32) {
    %c0_i32 = arith.constant 0 : i32
    %c0_i32_0 = arith.constant 0 : i32
    %c0_i32_1 = arith.constant 0 : i32
    %c0_i32_2 = arith.constant 0 : i32
    return %c0_i32, %c0_i32_0, %c0_i32_1 : i32, i32, i32
  }
  func.func @transform_2(%arg0: i32) -> (i32, i32) {
    %c0_i32 = arith.constant 0 : i32
    %c0_i32_0 = arith.constant 0 : i32
    %c0_i32_1 = arith.constant 0 : i32
    return %c0_i32, %c0_i32_0 : i32, i32
  }
  func.func @transform_3(%arg0: i32) -> (i32, i32) {
    %c0_i32 = arith.constant 0 : i32
    %c0_i32_0 = arith.constant 0 : i32
    %c0_i32_1 = arith.constant 0 : i32
    return %c0_i32, %c0_i32_0 : i32, i32
  }
  func.func @transform_4(%arg0: i32) -> (i32, i32) {
    %c0_i32 = arith.constant 0 : i32
    %c0_i32_0 = arith.constant 0 : i32
    %c0_i32_1 = arith.constant 0 : i32
    return %c0_i32, %c0_i32_0 : i32, i32
  }
  func.func @transform_5(%arg0: i32) -> (i32, i32) {
    %c0_i32 = arith.constant 0 : i32
    %c0_i32_0 = arith.constant 0 : i32
    %c0_i32_1 = arith.constant 0 : i32
    return %c0_i32, %c0_i32_0 : i32, i32
  }
  func.func @transform_6(%arg0: i32) -> (i32, i32, i32) {
    %c0_i32 = arith.constant 0 : i32
    %c0_i32_0 = arith.constant 0 : i32
    %c0_i32_1 = arith.constant 0 : i32
    return %arg0, %c0_i32, %c0_i32_0 : i32, i32, i32
  }
}

</mosaic_0001>

<llo_original>
// kernel: resblock_forward.1
$region0: #{resblock_forward.1}
  #allocation0 [shape = 'u32[]', space=smem, size = 0x4, offset = 0x4, fixed_abs, tag = 'smem constant byte address 0x4 - core index']
  #allocation1 [shape = 'u32[144,128]{1,0:T(1,128)}', space=vmem, size = 0x12000, scoped, tag = 'internal scratch']
  %s0 = inlined_call_operand.vmem [shape: f32[2,8,256], index: 0, kind: input, shape index: {}]
  %s1 = inlined_call_operand.vmem [shape: f32[9,1,256], index: 1, kind: input, shape index: {}]
  %s2 = inlined_call_operand.vmem [shape: f32[8,72], index: 2, kind: input, shape index: {}]
  %s3 = inlined_call_operand.vmem [shape: f32[8,1], index: 3, kind: input, shape index: {}]
  %s4 = inlined_call_operand.vmem [shape: f32[4,72], index: 4, kind: input, shape index: {}]
  %s5 = inlined_call_operand.vmem [shape: f32[4,1], index: 5, kind: input, shape index: {}]
  %s6 = inlined_call_operand.vmem [shape: f32[2,4,256], index: 6, kind: output, shape index: {}]
  %s7 = sld [smem:[#allocation0]]
  $region57: #{resblock_forward.1} parent=0
    _
  %s9 = ssub.s32 1, %s7
  %s10 = scalar_select 0, %s9, %s7
  loop: start=0, step=1, limit=4
  $region2: #{resblock_forward.1} parent=0 // loop_pre_header
    _
  $region3: #{resblock_forward.1} parent=0 // loop_header
    %s12 = sphi 0, %s16
    %p13 = scmp.ge.s32.totalorder %s12, 4
    %s22 = sphi 0, %s24
    %s25 = sphi 0, %s22
    %s26 = sphi 0, %s25
    %s42 = sphi 0, %s26
    %s46 = sphi 0, %s46
    %s48 = sphi 0, %s46
    %s49 = sphi 0, %s48
    %s63 = sphi 0, %s49
    %s67 = sphi 0, %s67
    %s69 = sphi 0, %s67
    %s70 = sphi 0, %s69
    %s84 = sphi 0, %s70
    %s88 = sphi 0, %s88
    %s90 = sphi 0, %s88
    %s91 = sphi 0, %s90
    %s105 = sphi 0, %s91
    %s109 = sphi 0, %s109
    %s111 = sphi 0, %s109
    %s112 = sphi 0, %s111
    %s126 = sphi 0, %s112
    %s130 = sphi 0, %s130
    %s132 = sphi 0, %s130
    %s133 = sphi 0, %s132
    %s147 = sphi 0, %s133
    %s153 = sphi 0, %s155
    %s156 = sphi 0, %s153
    %s157 = sphi 0, %s156
    %s173 = sphi 0, %s157
  $region4: #{resblock_forward.1} parent=0 // loop_header_branch
    %15 = sbr.rel (%p13) target = $region8
  $region5: #{resblock_forward.1} parent=0 // loop_body
    %s17 = ssub.s32 %s12, 1
    %s18 = ssub.s32 %s12, 2
    %s19 = sadd.s32 %s12, 1
    %s20 = ssub.s32 %s12, %s19
    %p21 = scmp.eq.s32.totalorder %s20, 0
    %s23 = sadd.s32 %s22, 1
    %s24 = scalar_select %p21, %s22, %s23
    %p27 = pneg %p21
    %p28 = scmp.eq.s32.totalorder %s12, 1
    %p29 = por %p27, %p28
    %p30 = scmp.ne.s32.totalorder %s22, %s25
    %p31 = scmp.eq.s32.totalorder %s12, 0
    %p32 = por %p30, %p31
    %p33 = scmp.ne.s32.totalorder %s22, %s25
    %p34 = scmp.eq.s32.totalorder %s17, 1
    %p35 = por %p33, %p34
    %p36 = scmp.ne.s32.totalorder %s25, %s26
    %p37 = scmp.eq.s32.totalorder %s17, 0
    %p38 = por %p36, %p37
    %p39 = scmp.ne.s32.totalorder %s25, %s26
    %p40 = scmp.eq.s32.totalorder %s18, 1
    %p41 = por %p39, %p40
    %p43 = scmp.ne.s32.totalorder %s26, %s42
    %p44 = scmp.eq.s32.totalorder %s18, 0
    %p45 = por %p43, %p44
    %s47 = sadd.s32 %s46, 1
    %p50 = scmp.eq.s32.totalorder %s12, 1
    %p51 = scmp.ne.s32.totalorder %s46, %s48
    %p52 = scmp.eq.s32.totalorder %s12, 0
    %p53 = por %p51, %p52
    %p54 = scmp.ne.s32.totalorder %s46, %s48
    %p55 = scmp.eq.s32.totalorder %s17, 1
    %p56 = por %p54, %p55
    %p57 = scmp.ne.s32.totalorder %s48, %s49
    %p58 = scmp.eq.s32.totalorder %s17, 0
    %p59 = por %p57, %p58
    %p60 = scmp.ne.s32.totalorder %s48, %s49
    %p61 = scmp.eq.s32.totalorder %s18, 1
    %p62 = por %p60, %p61
    %p64 = scmp.ne.s32.totalorder %s49, %s63
    %p65 = scmp.eq.s32.totalorder %s18, 0
    %p66 = por %p64, %p65
    %s68 = sadd.s32 %s67, 1
    %p71 = scmp.eq.s32.totalorder %s12, 1
    %p72 = scmp.ne.s32.totalorder %s67, %s69
    %p73 = scmp.eq.s32.totalorder %s12, 0
    %p74 = por %p72, %p73
    %p75 = scmp.ne.s32.totalorder %s67, %s69
    %p76 = scmp.eq.s32.totalorder %s17, 1
    %p77 = por %p75, %p76
    %p78 = scmp.ne.s32.totalorder %s69, %s70
    %p79 = scmp.eq.s32.totalorder %s17, 0
    %p80 = por %p78, %p79
    %p81 = scmp.ne.s32.totalorder %s69, %s70
    %p82 = scmp.eq.s32.totalorder %s18, 1
    %p83 = por %p81, %p82
    %p85 = scmp.ne.s32.totalorder %s70, %s84
    %p86 = scmp.eq.s32.totalorder %s18, 0
    %p87 = por %p85, %p86
    %s89 = sadd.s32 %s88, 1
    %p92 = scmp.eq.s32.totalorder %s12, 1
    %p93 = scmp.ne.s32.totalorder %s88, %s90
    %p94 = scmp.eq.s32.totalorder %s12, 0
    %p95 = por %p93, %p94
    %p96 = scmp.ne.s32.totalorder %s88, %s90
    %p97 = scmp.eq.s32.totalorder %s17, 1
    %p98 = por %p96, %p97
    %p99 = scmp.ne.s32.totalorder %s90, %s91
    %p100 = scmp.eq.s32.totalorder %s17, 0
    %p101 = por %p99, %p100
    %p102 = scmp.ne.s32.totalorder %s90, %s91
    %p103 = scmp.eq.s32.totalorder %s18, 1
    %p104 = por %p102, %p103
    %p106 = scmp.ne.s32.totalorder %s91, %s105
    %p107 = scmp.eq.s32.totalorder %s18, 0
    %p108 = por %p106, %p107
    %s110 = sadd.s32 %s109, 1
    %p113 = scmp.eq.s32.totalorder %s12, 1
    %p114 = scmp.ne.s32.totalorder %s109, %s111
    %p115 = scmp.eq.s32.totalorder %s12, 0
    %p116 = por %p114, %p115
    %p117 = scmp.ne.s32.totalorder %s109, %s111
    %p118 = scmp.eq.s32.totalorder %s17, 1
    %p119 = por %p117, %p118
    %p120 = scmp.ne.s32.totalorder %s111, %s112
    %p121 = scmp.eq.s32.totalorder %s17, 0
    %p122 = por %p120, %p121
    %p123 = scmp.ne.s32.totalorder %s111, %s112
    %p124 = scmp.eq.s32.totalorder %s18, 1
    %p125 = por %p123, %p124
    %p127 = scmp.ne.s32.totalorder %s112, %s126
    %p128 = scmp.eq.s32.totalorder %s18, 0
    %p129 = por %p127, %p128
    %s131 = sadd.s32 %s130, 1
    %p134 = scmp.eq.s32.totalorder %s12, 1
    %p135 = scmp.ne.s32.totalorder %s130, %s132
    %p136 = scmp.eq.s32.totalorder %s12, 0
    %p137 = por %p135, %p136
    %p138 = scmp.ne.s32.totalorder %s130, %s132
    %p139 = scmp.eq.s32.totalorder %s17, 1
    %p140 = por %p138, %p139
    %p141 = scmp.ne.s32.totalorder %s132, %s133
    %p142 = scmp.eq.s32.totalorder %s17, 0
    %p143 = por %p141, %p142
    %p144 = scmp.ne.s32.totalorder %s132, %s133
    %p145 = scmp.eq.s32.totalorder %s18, 1
    %p146 = por %p144, %p145
    %p148 = scmp.ne.s32.totalorder %s133, %s147
    %p149 = scmp.eq.s32.totalorder %s18, 0
    %p150 = por %p148, %p149
    %s151 = ssub.s32 %s12, %s19
    %p152 = scmp.eq.s32.totalorder %s151, 0
    %s154 = sadd.s32 %s153, 1
    %s155 = scalar_select %p152, %s153, %s154
    %p158 = pneg %p152
    %p159 = scmp.eq.s32.totalorder %s12, 1
    %p160 = por %p158, %p159
    %p161 = scmp.ne.s32.totalorder %s153, %s156
    %p162 = scmp.eq.s32.totalorder %s12, 0
    %p163 = por %p161, %p162
    %p164 = scmp.ne.s32.totalorder %s153, %s156
    %p165 = scmp.eq.s32.totalorder %s17, 1
    %p166 = por %p164, %p165
    %p167 = scmp.ne.s32.totalorder %s156, %s157
    %p168 = scmp.eq.s32.totalorder %s17, 0
    %p169 = por %p167, %p168
    %p170 = scmp.ne.s32.totalorder %s156, %s157
    %p171 = scmp.eq.s32.totalorder %s18, 1
    %p172 = por %p170, %p171
    %p174 = scmp.ne.s32.totalorder %s157, %s173
    %p175 = scmp.eq.s32.totalorder %s18, 0
    %p176 = por %p174, %p175
    %p177 = scmp.le.s32.totalorder 1, %s12
    %p178 = scmp.lt.s32.totalorder %s12, 3
    %p179 = pnand %p177, %p178
    %p180 = pneg %p179
    // Predicated region
    $region9: #{resblock_forward.1} parent=5 // pred_check
      _
    $region10: #{resblock_forward.1} parent=5 // pred_check_branch
      %182 = sbr.rel (%p179) target = $region12
    $region11: #{resblock_forward.1} parent=5 // pred_region
      %s183 = ssub.s32 %s12, 1
      // Predicated region
      $region13: #{resblock_forward.1} parent=11 // pred_check
        %p184 = pneg %p59
      $region14: #{resblock_forward.1} parent=11 // pred_check_branch
        %186 = sbr.rel (%p184) target = $region16
      $region15: #{resblock_forward.1} parent=11 // pred_region
        _
      $region16: #{resblock_forward.1} parent=11 // pred_fallthru
        _
      // Predicated region
      $region17: #{resblock_forward.1} parent=11 // pred_check
        %p187 = pneg %p80
      $region18: #{resblock_forward.1} parent=11 // pred_check_branch
        %189 = sbr.rel (%p187) target = $region20
      $region19: #{resblock_forward.1} parent=11 // pred_region
        _
      $region20: #{resblock_forward.1} parent=11 // pred_fallthru
        _
      // Predicated region
      $region21: #{resblock_forward.1} parent=11 // pred_check
        %p190 = pneg %p101
      $region22: #{resblock_forward.1} parent=11 // pred_check_branch
        %192 = sbr.rel (%p190) target = $region24
      $region23: #{resblock_forward.1} parent=11 // pred_region
        _
      $region24: #{resblock_forward.1} parent=11 // pred_fallthru
        _
      // Predicated region
      $region25: #{resblock_forward.1} parent=11 // pred_check
        %p193 = pneg %p122
      $region26: #{resblock_forward.1} parent=11 // pred_check_branch
        %195 = sbr.rel (%p193) target = $region28
      $region27: #{resblock_forward.1} parent=11 // pred_region
        _
      $region28: #{resblock_forward.1} parent=11 // pred_fallthru
        _
      // Predicated region
      $region29: #{resblock_forward.1} parent=11 // pred_check
        %p196 = pneg %p143
      $region30: #{resblock_forward.1} parent=11 // pred_check_branch
        %198 = sbr.rel (%p196) target = $region32
      $region31: #{resblock_forward.1} parent=11 // pred_region
        _
      $region32: #{resblock_forward.1} parent=11 // pred_fallthru
        _
    $region12: #{resblock_forward.1} parent=5 // pred_fallthru
      _
    %p199 = scmp.lt.s32.totalorder %s12, 2
    // Predicated region
    $region33: #{resblock_forward.1} parent=5 // pred_check
      %p200 = pneg %p199
    $region34: #{resblock_forward.1} parent=5 // pred_check_branch
      %202 = sbr.rel (%p200) target = $region36
    $region35: #{resblock_forward.1} parent=5 // pred_region
      // Predicated region
      $region37: #{resblock_forward.1} parent=35 // pred_check
        %p203 = pneg %p32
      $region38: #{resblock_forward.1} parent=35 // pred_check_branch
        %205 = sbr.rel (%p203) target = $region40
      $region39: #{resblock_forward.1} parent=35 // pred_region
        %p206 = scmp.lt.s32.totalorder %s12, 1
        %s207 = scalar_select %p206, %s12, 1
        %s208 = smul.addr %s207, 2
        %s209 = smul.addr %s208, 8
        %s210 = scalar_lea.vmem %s0, %s209
      $region40: #{resblock_forward.1} parent=35 // pred_fallthru
        _
    $region36: #{resblock_forward.1} parent=5 // pred_fallthru
      _
    %p211 = scmp.le.s32.totalorder 1, %s12
    %p212 = scmp.lt.s32.totalorder %s12, 3
    %p213 = pnand %p211, %p212
    %p214 = pneg %p213
    // Predicated region
    $region41: #{resblock_forward.1} parent=5 // pred_check
      _
    $region42: #{resblock_forward.1} parent=5 // pred_check_branch
      %216 = sbr.rel (%p213) target = $region44
    $region43: #{resblock_forward.1} parent=5 // pred_region
      %s217 = ssub.s32 %s12, 1
      %p218 = scmp.lt.s32.totalorder %s17, 1
      %s219 = scalar_select %p218, %s17, 1
      %s220 = smul.addr %s219, 2
      %s221 = smul.addr %s220, 8
      %s222 = scalar_lea.vmem %s0, %s221
      %p223 = pneg %p38
      %p224 = pneg %p35
      %p225 = pneg %p59
      %p226 = pneg %p56
      %p227 = pneg %p80
      %p228 = pneg %p77
      %p229 = pneg %p101
      %p230 = pneg %p98
      %p231 = pneg %p122
      %p232 = pneg %p119
      %p233 = pneg %p143
      %p234 = pneg %p140
      %p235 = pneg %p169
      %p236 = pneg %p166
      %p237 = scmp.lt.s32.totalorder %s17, 1
      %s238 = scalar_select %p237, %s17, 1
      %s239 = smul.addr %s238, 2
      %s240 = smul.addr %s239, 4
      %s241 = scalar_lea.vmem %s6, %s240
      %p242 = scmp.lt.s32.totalorder %s17, 1
      %s243 = scalar_select %p242, %s17, 1
      %s244 = smul.addr %s243, 2
      %s245 = smul.addr %s244, 8
      %s246 = scalar_lea.vmem %s0, %s245
      %p247 = scmp.lt.s32.totalorder %s17, 1
      %s248 = scalar_select %p247, %s17, 1
      %s249 = smul.addr %s248, 2
      %s250 = smul.addr %s249, 4
      %s251 = scalar_lea.vmem %s6, %s250
      %v252 = vld [vmem:[%s246] sm:$0xff]
      %v253 = vld [vmem:[%s246 + $0x8] sm:$0xff]
      %v254 = vld [vmem:[%s2] sm:$0xff]
      %v255 = vld [vmem:[%s3] sm:$0xff]
      %256 = vrot.lane.b32.xlu0 %v252, 17
      %v257 = vpop.permute.xlu0 %256
      %258 = vrot.lane.b32.xlu0 %v253, 17
      %v259 = vpop.permute.xlu0 %258
      %v260 = vlaneseq
      %v261 = vand.u32 %v260, 127
      %vm262 = vcmp.lt.s32.totalorder %v261, 17
      %v263 = vsel %vm262, %v257, %v259
      %v264 = vsel %vm262, %v259, %v257
      %v265 = vld [vmem:[%s1] sm:$0x3]
      %v267 = vlaneseq
      %v268 = vshrl.u32 %v267, 7
      %v269 = vsub.s32 0, %v268
      %v270 = vrot.slane %v265, %v269
      %v271 = vlaneseq
      %v272 = vshrl.u32 %v271, 7
      %v273 = vsub.s32 1, %v272
      %v274 = vrot.slane %v265, %v273
      %v277 = vmul.f32 %v264, %v270
      %v278 = vmul.f32 %v263, %v274
      %279 = vrot.lane.b32.xlu0 %v252, 16
      %v280 = vpop.permute.xlu0 %279
      %281 = vrot.lane.b32.xlu0 %v253, 16
      %v282 = vpop.permute.xlu0 %281
      %vm283 = vcmp.lt.s32.totalorder %v261, 16
      %v284 = vsel %vm283, %v280, %v282
      %v285 = vsel %vm283, %v282, %v280
      %s286 = scalar_lea.vmem %s1, 2
      %v287 = vld [vmem:[%s286] sm:$0x3]
      %v289 = vlaneseq
      %v290 = vshrl.u32 %v289, 7
      %v291 = vsub.s32 0, %v290
      %v292 = vrot.slane %v287, %v291
      %v293 = vlaneseq
      %v294 = vshrl.u32 %v293, 7
      %v295 = vsub.s32 1, %v294
      %v296 = vrot.slane %v287, %v295
      %v299 = vmul.f32 %v285, %v292
      %v300 = vmul.f32 %v284, %v296
      %301 = vrot.lane.b32.xlu0 %v252, 15
      %v302 = vpop.permute.xlu0 %301
      %303 = vrot.lane.b32.xlu0 %v253, 15
      %v304 = vpop.permute.xlu0 %303
      %vm305 = vcmp.lt.s32.totalorder %v261, 15
      %v306 = vsel %vm305, %v302, %v304
      %v307 = vsel %vm305, %v304, %v302
      %s308 = scalar_lea.vmem %s1, 4
      %v309 = vld [vmem:[%s308] sm:$0x3]
      %v311 = vlaneseq
      %v312 = vshrl.u32 %v311, 7
      %v313 = vsub.s32 0, %v312
      %v314 = vrot.slane %v309, %v313
      %v315 = vlaneseq
      %v316 = vshrl.u32 %v315, 7
      %v317 = vsub.s32 1, %v316
      %v318 = vrot.slane %v309, %v317
      %v321 = vmul.f32 %v307, %v314
      %v322 = vmul.f32 %v306, %v318
      %323 = vrot.lane.b32.xlu0 %v252, 1
      %v324 = vpop.permute.xlu0 %323
      %325 = vrot.lane.b32.xlu0 %v253, 1
      %v326 = vpop.permute.xlu0 %325
      %vm327 = vcmp.lt.s32.totalorder %v261, 1
      %v328 = vsel %vm327, %v324, %v326
      %v329 = vsel %vm327, %v326, %v324
      %s330 = scalar_lea.vmem %s1, 6
      %v331 = vld [vmem:[%s330] sm:$0x3]
      %v333 = vlaneseq
      %v334 = vshrl.u32 %v333, 7
      %v335 = vsub.s32 0, %v334
      %v336 = vrot.slane %v331, %v335
      %v337 = vlaneseq
      %v338 = vshrl.u32 %v337, 7
      %v339 = vsub.s32 1, %v338
      %v340 = vrot.slane %v331, %v339
      %v343 = vmul.f32 %v329, %v336
      %v344 = vmul.f32 %v328, %v340
      %345 = vrot.lane.b32.xlu0 %v252, 127
      %v346 = vpop.permute.xlu0 %345
      %347 = vrot.lane.b32.xlu0 %v253, 127
      %v348 = vpop.permute.xlu0 %347
      %vm349 = vcmp.lt.s32.totalorder %v261, 127
      %v350 = vsel %vm349, %v346, %v348
      %v351 = vsel %vm349, %v348, %v346
      %s352 = scalar_lea.vmem %s1, 10
      %v353 = vld [vmem:[%s352] sm:$0x3]
      %v355 = vlaneseq
      %v356 = vshrl.u32 %v355, 7
      %v357 = vsub.s32 0, %v356
      %v358 = vrot.slane %v353, %v357
      %v359 = vlaneseq
      %v360 = vshrl.u32 %v359, 7
      %v361 = vsub.s32 1, %v360
      %v362 = vrot.slane %v353, %v361
      %v365 = vmul.f32 %v350, %v358
      %v366 = vmul.f32 %v351, %v362
      %367 = vrot.lane.b32.xlu0 %v252, 113
      %v368 = vpop.permute.xlu0 %367
      %369 = vrot.lane.b32.xlu0 %v253, 113
      %v370 = vpop.permute.xlu0 %369
      %vm371 = vcmp.lt.s32.totalorder %v261, 113
      %v372 = vsel %vm371, %v368, %v370
      %v373 = vsel %vm371, %v370, %v368
      %s374 = scalar_lea.vmem %s1, 12
      %v375 = vld [vmem:[%s374] sm:$0x3]
      %v377 = vlaneseq
      %v378 = vshrl.u32 %v377, 7
      %v379 = vsub.s32 0, %v378
      %v380 = vrot.slane %v375, %v379
      %v381 = vlaneseq
      %v382 = vshrl.u32 %v381, 7
      %v383 = vsub.s32 1, %v382
      %v384 = vrot.slane %v375, %v383
      %v387 = vmul.f32 %v372, %v380
      %v388 = vmul.f32 %v373, %v384
      %389 = vrot.lane.b32.xlu0 %v252, 112
      %v390 = vpop.permute.xlu0 %389
      %391 = vrot.lane.b32.xlu0 %v253, 112
      %v392 = vpop.permute.xlu0 %391
      %vm393 = vcmp.lt.s32.totalorder %v261, 112
      %v394 = vsel %vm393, %v390, %v392
      %v395 = vsel %vm393, %v392, %v390
      %s396 = scalar_lea.vmem %s1, 14
      %v397 = vld [vmem:[%s396] sm:$0x3]
      %v399 = vlaneseq
      %v400 = vshrl.u32 %v399, 7
      %v401 = vsub.s32 0, %v400
      %v402 = vrot.slane %v397, %v401
      %v403 = vlaneseq
      %v404 = vshrl.u32 %v403, 7
      %v405 = vsub.s32 1, %v404
      %v406 = vrot.slane %v397, %v405
      %v409 = vmul.f32 %v394, %v402
      %v410 = vmul.f32 %v395, %v406
      %411 = vrot.lane.b32.xlu0 %v252, 111
      %v412 = vpop.permute.xlu0 %411
      %413 = vrot.lane.b32.xlu0 %v253, 111
      %v414 = vpop.permute.xlu0 %413
      %vm415 = vcmp.lt.s32.totalorder %v261, 111
      %v416 = vsel %vm415, %v412, %v414
      %v417 = vsel %vm415, %v414, %v412
      %s418 = scalar_lea.vmem %s1, 16
      %v419 = vld [vmem:[%s418] sm:$0x3]
      %v421 = vlaneseq
      %v422 = vshrl.u32 %v421, 7
      %v423 = vsub.s32 0, %v422
      %v424 = vrot.slane %v419, %v423
      %v425 = vlaneseq
      %v426 = vshrl.u32 %v425, 7
      %v427 = vsub.s32 1, %v426
      %v428 = vrot.slane %v419, %v427
      %v431 = vmul.f32 %v416, %v424
      %v432 = vmul.f32 %v417, %v428
      %434 = vset.pattern.permute.xlu0 0
      %435 = vperm.xlu0 %434, %v255
      %v436 = vpop.permute.xlu0 %435
      %vm438 = vcmask 588800
      %v440 = vsel %vm438, %v254, 0
      %442 = vmatprep.subr.mxu0 0.0
      %443 = vmatpush1.msra.mxu0 0.0
      %444 = vmatprep.subr.mxu0 0.0
      %445 = vmatpush1.msra.mxu0 0.0
      %446 = vmatprep.subr.mxu0 0.0
      %447 = vmatpush1.msra.mxu0 0.0
      %448 = vmatprep.subr.mxu0 0.0
      %449 = vmatpush1.msra.mxu0 0.0
      %450 = vmatprep.subr.mxu0 0.0
      %451 = vmatpush1.msra.mxu0 0.0
      %452 = vmatprep.subr.mxu0 0.0
      %453 = vmatpush1.msra.mxu0 0.0
      %454 = vmatprep.subr.mxu0 0.0
      %455 = vmatpush1.msra.mxu0 0.0
      %456 = vmatprep.subr.mxu0 %v432
      %457 = vmatpush1.msra.mxu0 %v431
      %458 = vmatprep.subr.mxu0 %v410
      %459 = vmatpush1.msra.mxu0 %v409
      %460 = vmatprep.subr.mxu0 %v388
      %461 = vmatpush1.msra.mxu0 %v387
      %462 = vmatprep.subr.mxu0 %v366
      %463 = vmatpush1.msra.mxu0 %v365
      %464 = vmatprep.subr.mxu0 %v253
      %465 = vmatpush1.msra.mxu0 %v252
      %466 = vmatprep.subr.mxu0 %v344
      %467 = vmatpush1.msra.mxu0 %v343
      %468 = vmatprep.subr.mxu0 %v322
      %469 = vmatpush1.msra.mxu0 %v321
      %470 = vmatprep.subr.mxu0 %v300
      %471 = vmatpush1.msra.mxu0 %v299
      %472 = vmatprep.subr.mxu0 %v278
      %473 = vmatpush1.msra.mxu0 %v277
      %474 = vmatprep.subr.mxu0 0.0
      %475 = vmatpush2.msra.mxu0 0.0
      %476 = vmatprep.subr.mxu0 0.0
      %477 = vmatpush2.msra.mxu0 0.0
      %478 = vmatprep.subr.mxu0 0.0
      %479 = vmatpush2.msra.mxu0 0.0
      %480 = vmatprep.subr.mxu0 0.0
      %481 = vmatpush2.msra.mxu0 0.0
      %482 = vmatprep.subr.mxu0 0.0
      %483 = vmatpush2.msra.mxu0 0.0
      %484 = vmatprep.subr.mxu0 0.0
      %485 = vmatpush2.msra.mxu0 0.0
      %486 = vmatprep.subr.mxu0 0.0
      %487 = vmatpush2.msra.mxu0 0.0
      %488 = vmatprep.subr.mxu0 0.0
      %489 = vmatpush2.msra.mxu0 0.0
      %490 = vmatprep.subr.mxu0 0.0
      %491 = vmatpush2.msra.mxu0 0.0
      %492 = vmatprep.subr.mxu0 0.0
      %493 = vmatpush2.msra.mxu0 0.0
      %494 = vmatprep.subr.mxu0 0.0
      %495 = vmatpush2.msra.mxu0 0.0
      %496 = vmatprep.subr.mxu0 0.0
      %497 = vmatpush2.msra.mxu0 0.0
      %498 = vmatprep.subr.mxu0 0.0
      %499 = vmatpush2.msra.mxu0 0.0
      %500 = vmatprep.subr.mxu0 0.0
      %501 = vmatpush2.msra.mxu0 0.0
      %502 = vmatprep.subr.mxu0 0.0
      %503 = vmatpush2.msra.mxu0 0.0
      %504 = vmatprep.subr.mxu0 0.0
      %505 = vmatpush2.msra.mxu0 0.0
      %506 = vmatprep.mubr.f32.mxu0 0.0
      %507 = vmatmul.mubr.f32.gmra.mxu0 %v440
      %v508 = vpop.f32.mrf.mxu0
      %v509 = vadd.f32 %v436, %v508
      %v510 = vpop.f32.mrf.mxu0
      %v511 = vadd.f32 %v436, %v510
      %512 = vdwg.mxu0
      %v513 = vmax.f32 %v509, 0.0
      %v514 = vmax.f32 %v511, 0.0
      %v515 = vld [vmem:[%s4] sm:$0xf]
      %v516 = vld [vmem:[%s5] sm:$0xf]
      %517 = vrot.lane.b32.xlu0 %v513, 17
      %v518 = vpop.permute.xlu0 %517
      %519 = vrot.lane.b32.xlu0 %v514, 17
      %v520 = vpop.permute.xlu0 %519
      %v521 = vsel %vm262, %v518, %v520
      %v522 = vsel %vm262, %v520, %v518
      %v523 = vmul.f32 %v522, %v270
      %v524 = vmul.f32 %v521, %v274
      %525 = vrot.lane.b32.xlu0 %v513, 16
      %v526 = vpop.permute.xlu0 %525
      %527 = vrot.lane.b32.xlu0 %v514, 16
      %v528 = vpop.permute.xlu0 %527
      %v529 = vsel %vm283, %v526, %v528
      %v530 = vsel %vm283, %v528, %v526
      %v531 = vmul.f32 %v530, %v292
      %v532 = vmul.f32 %v529, %v296
      %533 = vrot.lane.b32.xlu0 %v513, 15
      %v534 = vpop.permute.xlu0 %533
      %535 = vrot.lane.b32.xlu0 %v514, 15
      %v536 = vpop.permute.xlu0 %535
      %v537 = vsel %vm305, %v534, %v536
      %v538 = vsel %vm305, %v536, %v534
      %v539 = vmul.f32 %v538, %v314
      %v540 = vmul.f32 %v537, %v318
      %541 = vrot.lane.b32.xlu0 %v513, 1
      %v542 = vpop.permute.xlu0 %541
      %543 = vrot.lane.b32.xlu0 %v514, 1
      %v544 = vpop.permute.xlu0 %543
      %v545 = vsel %vm327, %v542, %v544
      %v546 = vsel %vm327, %v544, %v542
      %v547 = vmul.f32 %v546, %v336
      %v548 = vmul.f32 %v545, %v340
      %549 = vrot.lane.b32.xlu0 %v513, 127
      %v550 = vpop.permute.xlu0 %549
      %551 = vrot.lane.b32.xlu0 %v514, 127
      %v552 = vpop.permute.xlu0 %551
      %v553 = vsel %vm349, %v550, %v552
      %v554 = vsel %vm349, %v552, %v550
      %v555 = vmul.f32 %v553, %v358
      %v556 = vmul.f32 %v554, %v362
      %557 = vrot.lane.b32.xlu0 %v513, 113
      %v558 = vpop.permute.xlu0 %557
      %559 = vrot.lane.b32.xlu0 %v514, 113
      %v560 = vpop.permute.xlu0 %559
      %v561 = vsel %vm371, %v558, %v560
      %v562 = vsel %vm371, %v560, %v558
      %v563 = vmul.f32 %v561, %v380
      %v564 = vmul.f32 %v562, %v384
      %565 = vrot.lane.b32.xlu0 %v513, 112
      %v566 = vpop.permute.xlu0 %565
      %567 = vrot.lane.b32.xlu0 %v514, 112
      %v568 = vpop.permute.xlu0 %567
      %v569 = vsel %vm393, %v566, %v568
      %v570 = vsel %vm393, %v568, %v566
      %v571 = vmul.f32 %v569, %v402
      %v572 = vmul.f32 %v570, %v406
      %573 = vrot.lane.b32.xlu0 %v513, 111
      %v574 = vpop.permute.xlu0 %573
      %575 = vrot.lane.b32.xlu0 %v514, 111
      %v576 = vpop.permute.xlu0 %575
      %v577 = vsel %vm415, %v574, %v576
      %v578 = vsel %vm415, %v576, %v574
      %v579 = vmul.f32 %v577, %v424
      %v580 = vmul.f32 %v578, %v428
      %582 = vset.pattern.permute.xlu0 0
      %583 = vperm.xlu0 %582, %v516
      %v584 = vpop.permute.xlu0 %583
      %v587 = vsel %vm438, %v515, 0
      %589 = vmatprep.subr.mxu0 0.0
      %590 = vmatpush1.msra.mxu0 0.0
      %591 = vmatprep.subr.mxu0 0.0
      %592 = vmatpush1.msra.mxu0 0.0
      %593 = vmatprep.subr.mxu0 0.0
      %594 = vmatpush1.msra.mxu0 0.0
      %595 = vmatprep.subr.mxu0 0.0
      %596 = vmatpush1.msra.mxu0 0.0
      %597 = vmatprep.subr.mxu0 0.0
      %598 = vmatpush1.msra.mxu0 0.0
      %599 = vmatprep.subr.mxu0 0.0
      %600 = vmatpush1.msra.mxu0 0.0
      %601 = vmatprep.subr.mxu0 0.0
      %602 = vmatpush1.msra.mxu0 0.0
      %603 = vmatprep.subr.mxu0 %v580
      %604 = vmatpush1.msra.mxu0 %v579
      %605 = vmatprep.subr.mxu0 %v572
      %606 = vmatpush1.msra.mxu0 %v571
      %607 = vmatprep.subr.mxu0 %v564
      %608 = vmatpush1.msra.mxu0 %v563
      %609 = vmatprep.subr.mxu0 %v556
      %610 = vmatpush1.msra.mxu0 %v555
      %611 = vmatprep.subr.mxu0 %v514
      %612 = vmatpush1.msra.mxu0 %v513
      %613 = vmatprep.subr.mxu0 %v548
      %614 = vmatpush1.msra.mxu0 %v547
      %615 = vmatprep.subr.mxu0 %v540
      %616 = vmatpush1.msra.mxu0 %v539
      %617 = vmatprep.subr.mxu0 %v532
      %618 = vmatpush1.msra.mxu0 %v531
      %619 = vmatprep.subr.mxu0 %v524
      %620 = vmatpush1.msra.mxu0 %v523
      %621 = vmatprep.subr.mxu0 0.0
      %622 = vmatpush2.msra.mxu0 0.0
      %623 = vmatprep.subr.mxu0 0.0
      %624 = vmatpush2.msra.mxu0 0.0
      %625 = vmatprep.subr.mxu0 0.0
      %626 = vmatpush2.msra.mxu0 0.0
      %627 = vmatprep.subr.mxu0 0.0
      %628 = vmatpush2.msra.mxu0 0.0
      %629 = vmatprep.subr.mxu0 0.0
      %630 = vmatpush2.msra.mxu0 0.0
      %631 = vmatprep.subr.mxu0 0.0
      %632 = vmatpush2.msra.mxu0 0.0
      %633 = vmatprep.subr.mxu0 0.0
      %634 = vmatpush2.msra.mxu0 0.0
      %635 = vmatprep.subr.mxu0 0.0
      %636 = vmatpush2.msra.mxu0 0.0
      %637 = vmatprep.subr.mxu0 0.0
      %638 = vmatpush2.msra.mxu0 0.0
      %639 = vmatprep.subr.mxu0 0.0
      %640 = vmatpush2.msra.mxu0 0.0
      %641 = vmatprep.subr.mxu0 0.0
      %642 = vmatpush2.msra.mxu0 0.0
      %643 = vmatprep.subr.mxu0 0.0
      %644 = vmatpush2.msra.mxu0 0.0
      %645 = vmatprep.subr.mxu0 0.0
      %646 = vmatpush2.msra.mxu0 0.0
      %647 = vmatprep.subr.mxu0 0.0
      %648 = vmatpush2.msra.mxu0 0.0
      %649 = vmatprep.subr.mxu0 0.0
      %650 = vmatpush2.msra.mxu0 0.0
      %651 = vmatprep.subr.mxu0 0.0
      %652 = vmatpush2.msra.mxu0 0.0
      %653 = vmatprep.mubr.f32.mxu0 0.0
      %654 = vmatmul.mubr.f32.gmra.mxu0 %v587
      %v655 = vpop.f32.mrf.mxu0
      %v656 = vadd.f32 %v584, %v655
      %v657 = vpop.f32.mrf.mxu0
      %v658 = vadd.f32 %v584, %v657
      %659 = vdwg.mxu0
      %v660 = vadd.f32 %v656, %v252
      %v661 = vadd.f32 %v658, %v253
      %v664 = vcombine.low %v660, %v661
      %666 = vst [vmem:[%s251] sm:$0xff] %v664
      %p667 = scmp.lt.s32.totalorder %s17, 1
      %s668 = scalar_select %p667, %s17, 1
      %s669 = smul.addr %s668, 2
      %s670 = smul.addr %s669, 4
      %s671 = scalar_lea.vmem %s6, %s670
      // Predicated region
      $region45: #{resblock_forward.1} parent=43 // pred_check
        %p672 = pneg %p166
      $region46: #{resblock_forward.1} parent=43 // pred_check_branch
        %674 = sbr.rel (%p672) target = $region48
      $region47: #{resblock_forward.1} parent=43 // pred_region
        _
      $region48: #{resblock_forward.1} parent=43 // pred_fallthru
        _
    $region44: #{resblock_forward.1} parent=5 // pred_fallthru
      _
    %p675 = scmp.le.s32.totalorder 2, %s12
    // Predicated region
    $region49: #{resblock_forward.1} parent=5 // pred_check
      %p676 = pneg %p675
    $region50: #{resblock_forward.1} parent=5 // pred_check_branch
      %678 = sbr.rel (%p676) target = $region52
    $region51: #{resblock_forward.1} parent=5 // pred_region
      %s679 = ssub.s32 %s12, 2
      // Predicated region
      $region53: #{resblock_forward.1} parent=51 // pred_check
        %p680 = pneg %p172
      $region54: #{resblock_forward.1} parent=51 // pred_check_branch
        %682 = sbr.rel (%p680) target = $region56
      $region55: #{resblock_forward.1} parent=51 // pred_region
        %p683 = scmp.lt.s32.totalorder %s18, 1
        %s684 = scalar_select %p683, %s18, 1
        %s685 = smul.addr %s684, 2
        %s686 = smul.addr %s685, 4
        %s687 = scalar_lea.vmem %s6, %s686
      $region56: #{resblock_forward.1} parent=51 // pred_fallthru
        _
    $region52: #{resblock_forward.1} parent=5 // pred_fallthru
      _
  $region6: #{resblock_forward.1} parent=0 // loop_footer
    %s16 = sadd.s32 1, %s12
  $region7: #{resblock_forward.1} parent=0 // loop_footer_branch
    %11 = sbr.rel target = $region3
  $region8: #{resblock_forward.1} parent=0 // loop_exit
    _

</llo_original>
